<compile_context>
chip_gen: v7x
topology: tpu7x:2x2x1
jax: 0.10.0
libtpu: 0.0.40
codegen_flags: <defaults>
</compile_context>

<pallas_src>
import jax
import jax.numpy as jnp
from jax.experimental import pallas as pl
from jax.experimental.pallas import tpu as pltpu


def _pos_emb_kernel(w_ref, o_ref):
    # w_ref: (1, tf) weight tile (resident across the inner batch axis)
    # o_ref: (tb, tf) output block for this (feature-tile, batch-tile) step
    # Rank-matched sublane broadcast -> straight vld/vst stream.
    o_ref[...] = jnp.broadcast_to(w_ref[...], o_ref.shape)


def _align_down(v, m):
    return (v // m) * m


def _block_budget_bytes():
    """Per-output-block byte budget, capped by the chip's VMEM capacity."""
    try:
        cap = pltpu.get_tpu_info().vmem_capacity_bytes
    except Exception:  # not on TPU / info unavailable: assume the smallest (v7x)
        cap = 64 << 20
    # 2x double-buffered output block + 2x weight tile must fit with headroom.
    return max(1 << 20, min(8 << 20, cap // 6))


def positional_embedding_forward(x, weight, *, force_pallas=False):
    """Replicates PositionalEmbedding.forward.

    x:      any array whose leading dim is the batch size (values unused)
    weight: (max_len, d_model) embedding table
    returns (batch, max_len, d_model), dtype of weight
    """
    batch = x.shape[0]
    max_len, d_model = weight.shape
    feat = max_len * d_model
    itemsize = jnp.dtype(weight.dtype).itemsize
    out_bytes = batch * feat * itemsize

    # Tiny-output fast path: a pallas_call launch + pipeline prologue costs
    # several microseconds; a plain XLA broadcast is strictly faster below ~1MiB.
    if out_bytes < (1 << 20) and not force_pallas:
        return jnp.broadcast_to(weight[None, :, :], (batch, max_len, d_model))

    # Lane-dense presentation: flatten (max_len, d_model) to a single feature
    # axis so stores are wide, not d_model-wide masked partials.
    w2d = weight.reshape(1, feat)

    block_budget = _block_budget_bytes()
    tf_budget = max(128 * itemsize, block_budget // 16)

    # Feature tile: full axis if it fits the per-row budget (always layout
    # legal even when feat % 128 != 0); otherwise the largest 128-multiple
    # under budget, with a ragged (masked) final tile via cdiv.
    if feat * itemsize <= tf_budget:
        tf = feat
    else:
        tf = max(128, _align_down(tf_budget // itemsize, 128))

    # Batch tile under the output-block budget; sublane-pack aligned
    # (8 f32 / 16 bf16 / 32 int8-fp8) unless it covers the whole batch.
    tb = max(1, block_budget // (tf * itemsize))
    if tb >= batch:
        tb = batch
    else:
        pack = max(8, 32 // itemsize)
        tb = _align_down(tb, pack) if tb >= pack else max(8, _align_down(tb, 8))

    nb = pl.cdiv(batch, tb)
    nf = pl.cdiv(feat, tf)

    # Degenerate (1,1) grid on a non-trivial output: split so v7x's two
    # TensorCores can both drive store DMA. Negligible cost on 1-TC parts.
    if nb == 1 and nf == 1 and out_bytes > (2 << 20):
        if batch >= 16:
            tb = max(8, _align_down(batch // 2, 8))
            nb = pl.cdiv(batch, tb)
        elif feat >= 256:
            tf = -(-(feat // 2) // 128) * 128   # half, rounded up to 128
            nf = pl.cdiv(feat, tf)

    # Double-buffered output block + double-buffered weight tile + headroom.
    vmem_need = 2 * tb * tf * itemsize + 2 * tf * itemsize
    vmem_limit = int(vmem_need + (4 << 20))

    out2d = pl.pallas_call(
        _pos_emb_kernel,
        out_shape=jax.ShapeDtypeStruct((batch, feat), weight.dtype),
        grid_spec=pltpu.PrefetchScalarGridSpec(
            num_scalar_prefetch=0,
            grid=(nf, nb),  # feature OUTER, batch INNER -> weight tile resident
            in_specs=[
                pl.BlockSpec((1, tf), lambda f, b: (0, f)),
            ],
            out_specs=pl.BlockSpec((tb, tf), lambda f, b: (b, f)),
        ),
        compiler_params=pltpu.CompilerParams(
            dimension_semantics=("parallel", "parallel"),
            vmem_limit_bytes=vmem_limit,
        ),
        cost_estimate=pl.CostEstimate(
            flops=0,
            transcendentals=0,
            bytes_accessed=out_bytes + feat * itemsize,
        ),
    )(w2d)

    # Row-major reshape of trailing dims: free bitcast.
    return out2d.reshape(batch, max_len, d_model)


if __name__ == "__main__":
    # Small shapes consistent with the module: batch=2, max_len=8, d_model=32.
    batch, max_len, d_model = 2, 8, 32

    key = jax.random.PRNGKey(0)
    k_w, k_x = jax.random.split(key)

    # nn.Embedding default init: N(0, 1) — deterministic synthetic weights.
    pe_weight = jax.random.normal(k_w, (max_len, d_model), dtype=jnp.float32)

    # x: token-index-like input; only its batch size matters for forward().
    x = jax.random.randint(k_x, (batch, max_len), 0, max_len, dtype=jnp.int32)

    # Exercise the Pallas kernel explicitly (the default path would take the
    # tiny-output XLA fast path at this size).
    out = positional_embedding_forward(x, pe_weight, force_pallas=True)
    out = jax.block_until_ready(out)

    # Reference check: pure-JAX broadcast of the weight over batch.
    ref = jnp.broadcast_to(pe_weight[None, :, :], (batch, max_len, d_model))
    assert out.shape == (batch, max_len, d_model)
    assert out.dtype == pe_weight.dtype
    assert jnp.array_equal(out, ref)

    # Also check the default (fast-path) wrapper for coverage.
    out_fast = jax.block_until_ready(positional_embedding_forward(x, pe_weight))
    assert jnp.array_equal(out_fast, ref)

    print("KERNEL_OK")
</pallas_src>

<mosaic_0001>
module attributes {stable_mosaic.version = 11 : i64} {
  func.func @_pos_emb_kernel(%arg0: i32, %arg1: i32, %arg2: memref<1x256xf32, #tpu.memory_space<vmem>>, %arg3: memref<2x256xf32, #tpu.memory_space<vmem>>) attributes {dimension_semantics = [#tpu.dimension_semantics<parallel>, #tpu.dimension_semantics<parallel>], iteration_bounds = array<i64: 1, 1>, scalar_prefetch = 0 : i64, scratch_operands = 0 : i64, tpu.core_type = #tpu.core_type<tc>, window_params = [{transform_indices = @transform_0, window_bounds = array<i64: 1, 256>}, {transform_indices = @transform_1, window_bounds = array<i64: 2, 256>}]} {
    %c0 = arith.constant 0 : index
    %c0_0 = arith.constant 0 : index
    %0 = vector.load %arg2[%c0, %c0_0] : memref<1x256xf32, #tpu.memory_space<vmem>>, vector<1x256xf32>
    %1 = vector.shape_cast %0 : vector<1x256xf32> to vector<1x256xf32>
    %2 = vector.broadcast %1 : vector<1x256xf32> to vector<2x256xf32>
    %c0_1 = arith.constant 0 : index
    %c0_2 = arith.constant 0 : index
    %3 = vector.load %arg3[%c0_1, %c0_2] : memref<2x256xf32, #tpu.memory_space<vmem>>, vector<2x256xf32>
    tpu.vector_store %arg3[%c0_1, %c0_2], %2 {strides = array<i32>} : memref<2x256xf32, #tpu.memory_space<vmem>>, vector<2x256xf32>,
    return
  }
  func.func @transform_0(%arg0: i32, %arg1: i32) -> (i32, i32) {
    %c0_i32 = arith.constant 0 : i32
    %c0_i32_0 = arith.constant 0 : i32
    return %c0_i32, %arg0 : i32, i32
  }
  func.func @transform_1(%arg0: i32, %arg1: i32) -> (i32, i32) {
    %c0_i32 = arith.constant 0 : i32
    return %arg1, %arg0 : i32, i32
  }
}

</mosaic_0001>

<llo_original>
// kernel: tpu_custom_call.1
$region0: #{tpu_custom_call.1}
  #allocation0 [shape = 'u32[]', space=smem, size = 0x4, offset = 0x4, fixed_abs, tag = 'smem constant byte address 0x4 - core index']
  #allocation1 [shape = 'u32[144,128]{1,0:T(1,128)}', space=vmem, size = 0x12000, scoped, tag = 'internal scratch']
  %s0 = inlined_call_operand.hbm [shape: f32[1,256], index: 0, kind: input, shape index: {}]
  %s1 = inlined_call_operand.hbm [shape: f32[2,256], index: 1, kind: output, shape index: {}]
  %s2 = sld [smem:[#allocation0]]
  $region18: #{tpu_custom_call.1} parent=0
    _
  %s4 = ssub.s32 1, %s2
  %s5 = scalar_select 0, %s4, %s2
  $region1: #{tpu_custom_call.1} parent=0
    #allocation2 [shape = 'u8[1024]{0}', space=vmem, size = 0x400, scoped, tag = 'input window, operand 0, single buffered']
    #allocation3 [shape = 's32[1]{0}', space=sflag, size = 0x4, scoped, tag = 'scoped memory for tpu_custom_call.1']
    #allocation4 [shape = 's32[1]{0}', space=sflag, size = 0x4, scoped, tag = 'scoped memory for tpu_custom_call.1']
    #allocation5 [shape = 'u8[2048]{0}', space=vmem, size = 0x800, scoped, tag = 'output window, operand 0, single buffered']
    %6 = vsyncpa [#allocation3], 0
    %7 = vsyncpa [#allocation4], 0
    // Predicated region
    $region2: #{tpu_custom_call.1} parent=1 // pred_check
      _
    $region3: #{tpu_custom_call.1} parent=1 // pred_check_branch
      %9 = sbr.rel (0) target = $region5
    $region4: #{tpu_custom_call.1} parent=1 // pred_region
      %s11 = ssub.s32 32, 32
      %12 = vsyncadd [#allocation3], %s11
      %s14 = sshll.u32 [#allocation2], 4
      %s15 = int_to_ptr.vmem [resolvable:$true] %s14
      %17 = dma.hbm_to_vmem [thread:$0]  %s0, 32, %s15, [#allocation3]
    $region5: #{tpu_custom_call.1} parent=1 // pred_fallthru
      _
    // Predicated region
    $region6: #{tpu_custom_call.1} parent=1 // pred_check
      _
    $region7: #{tpu_custom_call.1} parent=1 // pred_check_branch
      %19 = sbr.rel (0) target = $region9
    $region8: #{tpu_custom_call.1} parent=1 // pred_region
      %20 = dma.done [#allocation3], 32
    $region9: #{tpu_custom_call.1} parent=1 // pred_fallthru
      _
    %v21 = vld [vmem:[#allocation2] sm:$0x3]
    %v23 = vlaneseq
    %v24 = vshrl.u32 %v23, 7
    %v25 = vsub.s32 0, %v24
    %v26 = vrot.slane %v21, %v25
    %v27 = vlaneseq
    %v28 = vshrl.u32 %v27, 7
    %v29 = vsub.s32 1, %v28
    %v30 = vrot.slane %v21, %v29
    %v31 = vcombine.low %v26, %v30
    %v33 = vunpack.c.l.s4 1983009808
    %v34 = vunpack.c.0.s8 %v33
    %v35 = vlaneseq
    %v36 = vshrl.u32 %v35, 7
    %v37 = vsub.s32 %v34, %v36
    %v38 = vrot.slane %v31, %v37
    %40 = vst [vmem:[#allocation5] sm:$0xf] %v38
    // Predicated region
    $region10: #{tpu_custom_call.1} parent=1 // pred_check
      _
    $region11: #{tpu_custom_call.1} parent=1 // pred_check_branch
      %42 = sbr.rel (0) target = $region13
    $region12: #{tpu_custom_call.1} parent=1 // pred_region
      %s44 = ssub.s32 64, 64
      %45 = vsyncadd [#allocation4], %s44
      %s47 = sshll.u32 [#allocation5], 4
      %s48 = int_to_ptr.vmem [resolvable:$true] %s47
      %50 = dma.vmem_to_hbm [thread:$0]  %s48, 64, %s1, [#allocation4]
    $region13: #{tpu_custom_call.1} parent=1 // pred_fallthru
      _
    // Predicated region
    $region14: #{tpu_custom_call.1} parent=1 // pred_check
      _
    $region15: #{tpu_custom_call.1} parent=1 // pred_check_branch
      %52 = sbr.rel (0) target = $region17
    $region16: #{tpu_custom_call.1} parent=1 // pred_region
      %53 = dma.done [#allocation4], 64
    $region17: #{tpu_custom_call.1} parent=1 // pred_fallthru
      _
    %54 = vsyncpa [#allocation3], 1
    %55 = vsyncpa [#allocation4], 1

</llo_original>
